<compile_context>
chip_gen: v7x
topology: tpu7x:2x2x1
jax: 0.10.0
libtpu: 0.0.40
codegen_flags: <defaults>
</compile_context>

<pallas_src>
import jax
import jax.numpy as jnp
from jax.experimental import pallas as pl
from jax.experimental.pallas import tpu as pltpu


def _round_up(v, m):
    return ((v + m - 1) // m) * m


def _atom_embed_sum_kernel(x_ref, w1_ref, b1_ref, w2_ref, b2_ref, batch_ref,
                           out_ref):
    i = pl.program_id(0)

    # ---- init the VMEM-resident accumulator on the first atom tile ----
    @pl.when(i == 0)
    def _():
        out_ref[...] = jnp.zeros_like(out_ref)

    # ---- atom embedding: Linear + ReLU (MXU + VPU) ----
    x = x_ref[...]                                               # (TILE_N, Cin)
    h = jnp.dot(x, w1_ref[...], preferred_element_type=jnp.float32)
    h = jnp.maximum(h + b1_ref[...], 0.0)                        # (TILE_N, Cout)

    # ---- inner model (approximated by one dense layer, see TODO) ----
    y = jnp.dot(h, w2_ref[...], preferred_element_type=jnp.float32)
    y = y + b2_ref[...]                                          # (TILE_N, D_pad)

    # ---- scatter_add over batch index: one-hot contraction on the MXU ----
    tile_n = x_ref.shape[0]
    b_pad = out_ref.shape[0]
    seg = batch_ref[...]                                         # (TILE_N, 1) i32
    one_hot = (seg == jax.lax.broadcasted_iota(jnp.int32, (tile_n, b_pad), 1)
               ).astype(jnp.float32)                             # (TILE_N, B_pad)
    out_ref[...] += jax.lax.dot_general(
        one_hot, y, (((0,), (0,)), ((), ())),
        preferred_element_type=jnp.float32)                      # (B_pad, D_pad)

    # ---- finalize on the last tile: ReLU + per-row max normalization ----
    @pl.when(i == pl.num_programs(0) - 1)
    def _():
        pooled = jnp.maximum(out_ref[...], 0.0)
        maxima = jnp.max(pooled, axis=1, keepdims=True)          # (B_pad, 1)
        # Guard all-zero (padded / empty) rows -> 0 instead of NaN.
        safe = jnp.where(maxima > 0.0, maxima, 1.0)
        out_ref[...] = pooled * pl.reciprocal(safe, approx=True)


def atom_embedding_and_sum(x, w1, b1, w2, b2, batch, num_graphs, *, tile_n=512):
    """x: (N, Cin) f32; batch: (N,) int32 in [0, num_graphs)."""
    n, cin = x.shape
    cout = w1.shape[1]
    d = w2.shape[1]

    # Lane/sublane-dense padded sizes.
    d_pad = _round_up(d, 128)
    b_pad = max(_round_up(num_graphs, 8), 8)
    tile_n = min(tile_n, _round_up(n, 8))
    assert tile_n % 8 == 0
    n_pad = _round_up(n, tile_n)

    # Zero-pad operands; padded atom rows get batch index -1 (never pooled).
    x_p = jnp.zeros((n_pad, cin), jnp.float32).at[:n].set(x)
    batch_p = jnp.full((n_pad, 1), -1, jnp.int32).at[:n, 0].set(
        batch.astype(jnp.int32))
    w2_p = jnp.zeros((cout, d_pad), jnp.float32).at[:, :d].set(w2)
    b2_p = jnp.zeros((1, d_pad), jnp.float32).at[:, :d].set(b2.reshape(1, d))
    b1_2d = b1.reshape(1, cout)

    grid = (n_pad // tile_n,)
    out = pl.pallas_call(
        _atom_embed_sum_kernel,
        out_shape=jax.ShapeDtypeStruct((b_pad, d_pad), jnp.float32),
        grid=grid,
        in_specs=[
            pl.BlockSpec((tile_n, cin), lambda i: (i, 0)),   # x tile
            pl.BlockSpec((cin, cout), lambda i: (0, 0)),     # w1
            pl.BlockSpec((1, cout), lambda i: (0, 0)),       # b1
            pl.BlockSpec((cout, d_pad), lambda i: (0, 0)),   # w2 (lane-padded)
            pl.BlockSpec((1, d_pad), lambda i: (0, 0)),      # b2 (lane-padded)
            pl.BlockSpec((tile_n, 1), lambda i: (i, 0)),     # batch indices
        ],
        # Same block index for every grid step -> VMEM-resident accumulator.
        out_specs=pl.BlockSpec((b_pad, d_pad), lambda i: (0, 0)),
        compiler_params=pltpu.CompilerParams(
            dimension_semantics=("arbitrary",),
            vmem_limit_bytes=32 * 1024 * 1024),
    )(x_p, w1, b1_2d, w2_p, b2_p, batch_p)

    return out[:num_graphs, :d]


def _reference(x, w1, b1, w2, b2, batch, num_graphs):
    h = jnp.maximum(x @ w1 + b1[None, :], 0.0)
    y = h @ w2 + b2[None, :]
    one_hot = (batch[:, None] == jnp.arange(num_graphs)[None, :]).astype(
        jnp.float32)
    pooled = jnp.maximum(one_hot.T @ y, 0.0)
    return pooled / jnp.max(pooled, axis=1, keepdims=True)


if __name__ == "__main__":
    # Small, module-consistent shapes:
    #   N=20 atoms, atom_type_in=4, atom_type_out=32, model output dim D=64,
    #   B=2 graphs.  tile_n=8 exercises the multi-step accumulator + padding.
    N, CIN, COUT, D, B = 20, 4, 32, 64, 2

    key = jax.random.PRNGKey(0)
    kx, kw1, kb1, kw2, kb2 = jax.random.split(key, 5)

    x = jax.random.normal(kx, (N, CIN), dtype=jnp.float32)
    # nn.Linear-style deterministic init: U(-1/sqrt(fan_in), 1/sqrt(fan_in))
    w1 = jax.random.uniform(kw1, (CIN, COUT), jnp.float32,
                            -1.0 / CIN ** 0.5, 1.0 / CIN ** 0.5)
    b1 = jax.random.uniform(kb1, (COUT,), jnp.float32,
                            -1.0 / CIN ** 0.5, 1.0 / CIN ** 0.5)
    w2 = jax.random.uniform(kw2, (COUT, D), jnp.float32,
                            -1.0 / COUT ** 0.5, 1.0 / COUT ** 0.5)
    b2 = jax.random.uniform(kb2, (D,), jnp.float32,
                            -1.0 / COUT ** 0.5, 1.0 / COUT ** 0.5)
    batch = jnp.concatenate(
        [jnp.zeros(N // 2, jnp.int32), jnp.ones(N - N // 2, jnp.int32)])

    out = atom_embedding_and_sum(x, w1, b1, w2, b2, batch, B, tile_n=8)
    out = jax.block_until_ready(out)

    ref = _reference(x, w1, b1, w2, b2, batch, B)
    assert out.shape == (B, D)
    err = float(jnp.max(jnp.abs(out - ref)))
    # approx reciprocal in the finalize -> slightly relaxed tolerance
    assert jnp.allclose(out, ref, atol=1e-2, rtol=1e-2), f"mismatch, max err {err}"
    print("KERNEL_OK")
</pallas_src>

<mosaic_0001>
module attributes {stable_mosaic.version = 11 : i64} {
  func.func @_atom_embed_sum_kernel(%arg0: i32, %arg1: memref<8x4xf32, #tpu.memory_space<vmem>>, %arg2: memref<4x32xf32, #tpu.memory_space<vmem>>, %arg3: memref<1x32xf32, #tpu.memory_space<vmem>>, %arg4: memref<32x128xf32, #tpu.memory_space<vmem>>, %arg5: memref<1x128xf32, #tpu.memory_space<vmem>>, %arg6: memref<8x1xi32, #tpu.memory_space<vmem>>, %arg7: memref<8x128xf32, #tpu.memory_space<vmem>>) attributes {dimension_semantics = [#tpu.dimension_semantics<arbitrary>], iteration_bounds = array<i64: 3>, scalar_prefetch = 0 : i64, scratch_operands = 0 : i64, tpu.core_type = #tpu.core_type<tc>, window_params = [{transform_indices = @transform_0, window_bounds = array<i64: 8, 4>}, {pipeline_mode = #tpu.pipeline_mode<synchronous>, transform_indices = @transform_1, window_bounds = array<i64: 4, 32>}, {pipeline_mode = #tpu.pipeline_mode<synchronous>, transform_indices = @transform_2, window_bounds = array<i64: 1, 32>}, {pipeline_mode = #tpu.pipeline_mode<synchronous>, transform_indices = @transform_3, window_bounds = array<i64: 32, 128>}, {pipeline_mode = #tpu.pipeline_mode<synchronous>, transform_indices = @transform_4, window_bounds = array<i64: 1, 128>}, {transform_indices = @transform_5, window_bounds = array<i64: 8, 1>}, {pipeline_mode = #tpu.pipeline_mode<synchronous>, transform_indices = @transform_6, window_bounds = array<i64: 8, 128>}]} {
    %c0_i32 = arith.constant 0 : i32
    %0 = arith.cmpi eq, %arg0, %c0_i32 : i32
    %1 = arith.extui %0 : i1 to i32
    %c0_i32_0 = arith.constant 0 : i32
    %2 = arith.cmpi ne, %1, %c0_i32_0 : i32
    scf.if %2 {
      %cst_20 = arith.constant 0.000000e+00 : f32
      %29 = vector.broadcast %cst_20 : f32 to vector<8x128xf32>
      %c0_21 = arith.constant 0 : index
      %c0_22 = arith.constant 0 : index
      %30 = vector.load %arg7[%c0_21, %c0_22] : memref<8x128xf32, #tpu.memory_space<vmem>>, vector<8x128xf32>
      tpu.vector_store %arg7[%c0_21, %c0_22], %29 {strides = array<i32>} : memref<8x128xf32, #tpu.memory_space<vmem>>, vector<8x128xf32>,
    } else {
    }
    %c0 = arith.constant 0 : index
    %c0_1 = arith.constant 0 : index
    %3 = vector.load %arg1[%c0, %c0_1] : memref<8x4xf32, #tpu.memory_space<vmem>>, vector<8x4xf32>
    %c0_2 = arith.constant 0 : index
    %c0_3 = arith.constant 0 : index
    %4 = vector.load %arg2[%c0_2, %c0_3] : memref<4x32xf32, #tpu.memory_space<vmem>>, vector<4x32xf32>
    %cst = arith.constant dense<0.000000e+00> : vector<8x32xf32>
    %5 = tpu.matmul %3, %4, %cst {dimension_numbers = #tpu.dot_dimension_numbers<[1], [0], [0], [1], [0, 0, 1, 1], [], []>} : vector<8x4xf32>, vector<4x32xf32>, vector<8x32xf32> -> vector<8x32xf32>
    %c0_4 = arith.constant 0 : index
    %c0_5 = arith.constant 0 : index
    %6 = vector.load %arg3[%c0_4, %c0_5] : memref<1x32xf32, #tpu.memory_space<vmem>>, vector<1x32xf32>
    %7 = vector.broadcast %6 : vector<1x32xf32> to vector<8x32xf32>
    %8 = arith.addf %5, %7 : vector<8x32xf32>
    %cst_6 = arith.constant 0.000000e+00 : f32
    %9 = vector.broadcast %cst_6 : f32 to vector<8x32xf32>
    %10 = arith.maximumf %8, %9 : vector<8x32xf32>
    %c0_7 = arith.constant 0 : index
    %c0_8 = arith.constant 0 : index
    %11 = vector.load %arg4[%c0_7, %c0_8] : memref<32x128xf32, #tpu.memory_space<vmem>>, vector<32x128xf32>
    %cst_9 = arith.constant dense<0.000000e+00> : vector<8x128xf32>
    %12 = tpu.matmul %10, %11, %cst_9 {dimension_numbers = #tpu.dot_dimension_numbers<[1], [0], [0], [1], [0, 0, 1, 1], [], []>} : vector<8x32xf32>, vector<32x128xf32>, vector<8x128xf32> -> vector<8x128xf32>
    %c0_10 = arith.constant 0 : index
    %c0_11 = arith.constant 0 : index
    %13 = vector.load %arg5[%c0_10, %c0_11] : memref<1x128xf32, #tpu.memory_space<vmem>>, vector<1x128xf32>
    %14 = vector.broadcast %13 : vector<1x128xf32> to vector<8x128xf32>
    %15 = arith.addf %12, %14 : vector<8x128xf32>
    %c0_12 = arith.constant 0 : index
    %c0_13 = arith.constant 0 : index
    %16 = vector.load %arg6[%c0_12, %c0_13] : memref<8x1xi32, #tpu.memory_space<vmem>>, vector<8x1xi32>
    %17 = tpu.iota {dimensions = array<i32: 1>} : vector<8x8xi32>
    %18 = vector.broadcast %16 : vector<8x1xi32> to vector<8x8xi32>
    %19 = arith.cmpi eq, %18, %17 : vector<8x8xi32>
    %20 = arith.extui %19 : vector<8x8xi1> to vector<8x8xi32>
    %21 = arith.sitofp %20 : vector<8x8xi32> to vector<8x8xf32>
    %c0_14 = arith.constant 0 : index
    %c0_15 = arith.constant 0 : index
    %22 = vector.load %arg7[%c0_14, %c0_15] : memref<8x128xf32, #tpu.memory_space<vmem>>, vector<8x128xf32>
    %cst_16 = arith.constant dense<0.000000e+00> : vector<8x128xf32>
    %23 = tpu.matmul %21, %15, %cst_16 {dimension_numbers = #tpu.dot_dimension_numbers<[0], [0], [1], [1], [0, 1, 1, 1], [], []>} : vector<8x8xf32>, vector<8x128xf32>, vector<8x128xf32> -> vector<8x128xf32>
    %24 = arith.addf %22, %23 : vector<8x128xf32>
    %c0_17 = arith.constant 0 : index
    %c0_18 = arith.constant 0 : index
    %25 = vector.load %arg7[%c0_17, %c0_18] : memref<8x128xf32, #tpu.memory_space<vmem>>, vector<8x128xf32>
    tpu.vector_store %arg7[%c0_17, %c0_18], %24 {strides = array<i32>} : memref<8x128xf32, #tpu.memory_space<vmem>>, vector<8x128xf32>,
    %c2_i32 = arith.constant 2 : i32
    %26 = arith.cmpi eq, %arg0, %c2_i32 : i32
    %27 = arith.extui %26 : i1 to i32
    %c0_i32_19 = arith.constant 0 : i32
    %28 = arith.cmpi ne, %27, %c0_i32_19 : i32
    scf.if %28 {
      %c0_20 = arith.constant 0 : index
      %c0_21 = arith.constant 0 : index
      %29 = vector.load %arg7[%c0_20, %c0_21] : memref<8x128xf32, #tpu.memory_space<vmem>>, vector<8x128xf32>
      %cst_22 = arith.constant 0.000000e+00 : f32
      %30 = vector.broadcast %cst_22 : f32 to vector<8x128xf32>
      %31 = arith.maximumf %29, %30 : vector<8x128xf32>
      %cst_23 = arith.constant dense<0xFF800000> : vector<8xf32>
      %32 = vector.multi_reduction <maximumf>, %31, %cst_23 [1] : vector<8x128xf32> to vector<8xf32>
      %33 = vector.shape_cast %32 : vector<8xf32> to vector<8x1xf32>
      %cst_24 = arith.constant 0.000000e+00 : f32
      %34 = vector.broadcast %cst_24 : f32 to vector<8x1xf32>
      %35 = arith.cmpf ogt, %33, %34 : vector<8x1xf32>
      %cst_25 = arith.constant 1.000000e+00 : f32
      %36 = vector.broadcast %cst_25 : f32 to vector<8x1xf32>
      %37 = arith.select %35, %33, %36 : vector<8x1xi1>, vector<8x1xf32>
      %38 = tpu.reciprocal %37 {approx = true} : vector<8x1xf32> -> vector<8x1xf32>
      %39 = vector.broadcast %38 : vector<8x1xf32> to vector<8x128xf32>
      %40 = arith.mulf %31, %39 : vector<8x128xf32>
      %c0_26 = arith.constant 0 : index
      %c0_27 = arith.constant 0 : index
      %41 = vector.load %arg7[%c0_26, %c0_27] : memref<8x128xf32, #tpu.memory_space<vmem>>, vector<8x128xf32>
      tpu.vector_store %arg7[%c0_26, %c0_27], %40 {strides = array<i32>} : memref<8x128xf32, #tpu.memory_space<vmem>>, vector<8x128xf32>,
    } else {
    }
    return
  }
  func.func @transform_0(%arg0: i32) -> (i32, i32) {
    %c0_i32 = arith.constant 0 : i32
    %c0_i32_0 = arith.constant 0 : i32
    return %arg0, %c0_i32 : i32, i32
  }
  func.func @transform_1(%arg0: i32) -> (i32, i32) {
    %c0_i32 = arith.constant 0 : i32
    %c0_i32_0 = arith.constant 0 : i32
    %c0_i32_1 = arith.constant 0 : i32
    return %c0_i32, %c0_i32_0 : i32, i32
  }
  func.func @transform_2(%arg0: i32) -> (i32, i32) {
    %c0_i32 = arith.constant 0 : i32
    %c0_i32_0 = arith.constant 0 : i32
    %c0_i32_1 = arith.constant 0 : i32
    return %c0_i32, %c0_i32_0 : i32, i32
  }
  func.func @transform_3(%arg0: i32) -> (i32, i32) {
    %c0_i32 = arith.constant 0 : i32
    %c0_i32_0 = arith.constant 0 : i32
    %c0_i32_1 = arith.constant 0 : i32
    return %c0_i32, %c0_i32_0 : i32, i32
  }
  func.func @transform_4(%arg0: i32) -> (i32, i32) {
    %c0_i32 = arith.constant 0 : i32
    %c0_i32_0 = arith.constant 0 : i32
    %c0_i32_1 = arith.constant 0 : i32
    return %c0_i32, %c0_i32_0 : i32, i32
  }
  func.func @transform_5(%arg0: i32) -> (i32, i32) {
    %c0_i32 = arith.constant 0 : i32
    %c0_i32_0 = arith.constant 0 : i32
    return %arg0, %c0_i32 : i32, i32
  }
  func.func @transform_6(%arg0: i32) -> (i32, i32) {
    %c0_i32 = arith.constant 0 : i32
    %c0_i32_0 = arith.constant 0 : i32
    %c0_i32_1 = arith.constant 0 : i32
    return %c0_i32, %c0_i32_0 : i32, i32
  }
}

</mosaic_0001>

<llo_original>
// kernel: tpu_custom_call.1
$region0: #{tpu_custom_call.1}
  #allocation0 [shape = 'u32[]', space=smem, size = 0x4, offset = 0x4, fixed_abs, tag = 'smem constant byte address 0x4 - core index']
  #allocation1 [shape = 'u32[144,128]{1,0:T(1,128)}', space=vmem, size = 0x12000, scoped, tag = 'internal scratch']
  %s0 = inlined_call_operand.vmem [shape: f32[24,4], index: 0, kind: input, shape index: {}]
  %s1 = inlined_call_operand.vmem [shape: f32[4,32], index: 1, kind: input, shape index: {}]
  %s2 = inlined_call_operand.vmem [shape: f32[1,32], index: 2, kind: input, shape index: {}]
  %s3 = inlined_call_operand.vmem [shape: f32[32,128], index: 3, kind: input, shape index: {}]
  %s4 = inlined_call_operand.vmem [shape: f32[1,128], index: 4, kind: input, shape index: {}]
  %s5 = inlined_call_operand.vmem [shape: s32[24,1], index: 5, kind: input, shape index: {}]
  %s6 = inlined_call_operand.hbm [shape: f32[8,128], index: 6, kind: output, shape index: {}]
  %s7 = sld [smem:[#allocation0]]
  $region65: #{tpu_custom_call.1} parent=0
    _
  %s9 = ssub.s32 1, %s7
  %s10 = scalar_select 0, %s9, %s7
  $region1: #{tpu_custom_call.1} parent=0
    #allocation2 [shape = 'u8[4096]{0}', space=vmem, size = 0x1000, scoped, tag = 'output window, operand 0, single buffered']
    #allocation3 [shape = 's32[2]{0}', space=sflag, size = 0x8, scoped, tag = 'scoped memory for tpu_custom_call.1']
    %11 = vsyncpa [#allocation3], 0
    loop: start=0, step=1, limit=5
    $region2: #{tpu_custom_call.1} parent=1 // loop_pre_header
      _
    $region3: #{tpu_custom_call.1} parent=1 // loop_header
      %s13 = sphi 0, %s17
      %p14 = scmp.ge.s32.totalorder %s13, 5
      %s23 = sphi 0, %s25
      %s26 = sphi 0, %s23
      %s27 = sphi 0, %s26
      %s43 = sphi 0, %s27
      %s47 = sphi 0, %s47
      %s49 = sphi 0, %s47
      %s50 = sphi 0, %s49
      %s64 = sphi 0, %s50
      %s68 = sphi 0, %s68
      %s70 = sphi 0, %s68
      %s71 = sphi 0, %s70
      %s85 = sphi 0, %s71
      %s89 = sphi 0, %s89
      %s91 = sphi 0, %s89
      %s92 = sphi 0, %s91
      %s106 = sphi 0, %s92
      %s110 = sphi 0, %s110
      %s112 = sphi 0, %s110
      %s113 = sphi 0, %s112
      %s127 = sphi 0, %s113
      %s133 = sphi 0, %s135
      %s136 = sphi 0, %s133
      %s137 = sphi 0, %s136
      %s153 = sphi 0, %s137
      %s157 = sphi 0, %s157
      %s159 = sphi 0, %s157
      %s160 = sphi 0, %s159
      %s174 = sphi 0, %s160
    $region4: #{tpu_custom_call.1} parent=1 // loop_header_branch
      %16 = sbr.rel (%p14) target = $region8
    $region5: #{tpu_custom_call.1} parent=1 // loop_body
      %s18 = ssub.s32 %s13, 1
      %s19 = ssub.s32 %s13, 2
      %s20 = sadd.s32 %s13, 1
      %s21 = ssub.s32 %s13, %s20
      %p22 = scmp.eq.s32.totalorder %s21, 0
      %s24 = sadd.s32 %s23, 1
      %s25 = scalar_select %p22, %s23, %s24
      %p28 = pneg %p22
      %p29 = scmp.eq.s32.totalorder %s13, 2
      %p30 = por %p28, %p29
      %p31 = scmp.ne.s32.totalorder %s23, %s26
      %p32 = scmp.eq.s32.totalorder %s13, 0
      %p33 = por %p31, %p32
      %p34 = scmp.ne.s32.totalorder %s23, %s26
      %p35 = scmp.eq.s32.totalorder %s18, 2
      %p36 = por %p34, %p35
      %p37 = scmp.ne.s32.totalorder %s26, %s27
      %p38 = scmp.eq.s32.totalorder %s18, 0
      %p39 = por %p37, %p38
      %p40 = scmp.ne.s32.totalorder %s26, %s27
      %p41 = scmp.eq.s32.totalorder %s19, 2
      %p42 = por %p40, %p41
      %p44 = scmp.ne.s32.totalorder %s27, %s43
      %p45 = scmp.eq.s32.totalorder %s19, 0
      %p46 = por %p44, %p45
      %s48 = sadd.s32 %s47, 1
      %p51 = scmp.eq.s32.totalorder %s13, 2
      %p52 = scmp.ne.s32.totalorder %s47, %s49
      %p53 = scmp.eq.s32.totalorder %s13, 0
      %p54 = por %p52, %p53
      %p55 = scmp.ne.s32.totalorder %s47, %s49
      %p56 = scmp.eq.s32.totalorder %s18, 2
      %p57 = por %p55, %p56
      %p58 = scmp.ne.s32.totalorder %s49, %s50
      %p59 = scmp.eq.s32.totalorder %s18, 0
      %p60 = por %p58, %p59
      %p61 = scmp.ne.s32.totalorder %s49, %s50
      %p62 = scmp.eq.s32.totalorder %s19, 2
      %p63 = por %p61, %p62
      %p65 = scmp.ne.s32.totalorder %s50, %s64
      %p66 = scmp.eq.s32.totalorder %s19, 0
      %p67 = por %p65, %p66
      %s69 = sadd.s32 %s68, 1
      %p72 = scmp.eq.s32.totalorder %s13, 2
      %p73 = scmp.ne.s32.totalorder %s68, %s70
      %p74 = scmp.eq.s32.totalorder %s13, 0
      %p75 = por %p73, %p74
      %p76 = scmp.ne.s32.totalorder %s68, %s70
      %p77 = scmp.eq.s32.totalorder %s18, 2
      %p78 = por %p76, %p77
      %p79 = scmp.ne.s32.totalorder %s70, %s71
      %p80 = scmp.eq.s32.totalorder %s18, 0
      %p81 = por %p79, %p80
      %p82 = scmp.ne.s32.totalorder %s70, %s71
      %p83 = scmp.eq.s32.totalorder %s19, 2
      %p84 = por %p82, %p83
      %p86 = scmp.ne.s32.totalorder %s71, %s85
      %p87 = scmp.eq.s32.totalorder %s19, 0
      %p88 = por %p86, %p87
      %s90 = sadd.s32 %s89, 1
      %p93 = scmp.eq.s32.totalorder %s13, 2
      %p94 = scmp.ne.s32.totalorder %s89, %s91
      %p95 = scmp.eq.s32.totalorder %s13, 0
      %p96 = por %p94, %p95
      %p97 = scmp.ne.s32.totalorder %s89, %s91
      %p98 = scmp.eq.s32.totalorder %s18, 2
      %p99 = por %p97, %p98
      %p100 = scmp.ne.s32.totalorder %s91, %s92
      %p101 = scmp.eq.s32.totalorder %s18, 0
      %p102 = por %p100, %p101
      %p103 = scmp.ne.s32.totalorder %s91, %s92
      %p104 = scmp.eq.s32.totalorder %s19, 2
      %p105 = por %p103, %p104
      %p107 = scmp.ne.s32.totalorder %s92, %s106
      %p108 = scmp.eq.s32.totalorder %s19, 0
      %p109 = por %p107, %p108
      %s111 = sadd.s32 %s110, 1
      %p114 = scmp.eq.s32.totalorder %s13, 2
      %p115 = scmp.ne.s32.totalorder %s110, %s112
      %p116 = scmp.eq.s32.totalorder %s13, 0
      %p117 = por %p115, %p116
      %p118 = scmp.ne.s32.totalorder %s110, %s112
      %p119 = scmp.eq.s32.totalorder %s18, 2
      %p120 = por %p118, %p119
      %p121 = scmp.ne.s32.totalorder %s112, %s113
      %p122 = scmp.eq.s32.totalorder %s18, 0
      %p123 = por %p121, %p122
      %p124 = scmp.ne.s32.totalorder %s112, %s113
      %p125 = scmp.eq.s32.totalorder %s19, 2
      %p126 = por %p124, %p125
      %p128 = scmp.ne.s32.totalorder %s113, %s127
      %p129 = scmp.eq.s32.totalorder %s19, 0
      %p130 = por %p128, %p129
      %s131 = ssub.s32 %s13, %s20
      %p132 = scmp.eq.s32.totalorder %s131, 0
      %s134 = sadd.s32 %s133, 1
      %s135 = scalar_select %p132, %s133, %s134
      %p138 = pneg %p132
      %p139 = scmp.eq.s32.totalorder %s13, 2
      %p140 = por %p138, %p139
      %p141 = scmp.ne.s32.totalorder %s133, %s136
      %p142 = scmp.eq.s32.totalorder %s13, 0
      %p143 = por %p141, %p142
      %p144 = scmp.ne.s32.totalorder %s133, %s136
      %p145 = scmp.eq.s32.totalorder %s18, 2
      %p146 = por %p144, %p145
      %p147 = scmp.ne.s32.totalorder %s136, %s137
      %p148 = scmp.eq.s32.totalorder %s18, 0
      %p149 = por %p147, %p148
      %p150 = scmp.ne.s32.totalorder %s136, %s137
      %p151 = scmp.eq.s32.totalorder %s19, 2
      %p152 = por %p150, %p151
      %p154 = scmp.ne.s32.totalorder %s137, %s153
      %p155 = scmp.eq.s32.totalorder %s19, 0
      %p156 = por %p154, %p155
      %s158 = sadd.s32 %s157, 1
      %p161 = scmp.eq.s32.totalorder %s13, 2
      %p162 = scmp.ne.s32.totalorder %s157, %s159
      %p163 = scmp.eq.s32.totalorder %s13, 0
      %p164 = por %p162, %p163
      %p165 = scmp.ne.s32.totalorder %s157, %s159
      %p166 = scmp.eq.s32.totalorder %s18, 2
      %p167 = por %p165, %p166
      %p168 = scmp.ne.s32.totalorder %s159, %s160
      %p169 = scmp.eq.s32.totalorder %s18, 0
      %p170 = por %p168, %p169
      %p171 = scmp.ne.s32.totalorder %s159, %s160
      %p172 = scmp.eq.s32.totalorder %s19, 2
      %p173 = por %p171, %p172
      %p175 = scmp.ne.s32.totalorder %s160, %s174
      %p176 = scmp.eq.s32.totalorder %s19, 0
      %p177 = por %p175, %p176
      %p178 = scmp.le.s32.totalorder 1, %s13
      %p179 = scmp.lt.s32.totalorder %s13, 4
      %p180 = pnand %p178, %p179
      %p181 = pneg %p180
      // Predicated region
      $region9: #{tpu_custom_call.1} parent=5 // pred_check
        _
      $region10: #{tpu_custom_call.1} parent=5 // pred_check_branch
        %183 = sbr.rel (%p180) target = $region12
      $region11: #{tpu_custom_call.1} parent=5 // pred_region
        %s184 = ssub.s32 %s13, 1
        // Predicated region
        $region13: #{tpu_custom_call.1} parent=11 // pred_check
          %p185 = pneg %p60
        $region14: #{tpu_custom_call.1} parent=11 // pred_check_branch
          %187 = sbr.rel (%p185) target = $region16
        $region15: #{tpu_custom_call.1} parent=11 // pred_region
          _
        $region16: #{tpu_custom_call.1} parent=11 // pred_fallthru
          _
        // Predicated region
        $region17: #{tpu_custom_call.1} parent=11 // pred_check
          %p188 = pneg %p81
        $region18: #{tpu_custom_call.1} parent=11 // pred_check_branch
          %190 = sbr.rel (%p188) target = $region20
        $region19: #{tpu_custom_call.1} parent=11 // pred_region
          _
        $region20: #{tpu_custom_call.1} parent=11 // pred_fallthru
          _
        // Predicated region
        $region21: #{tpu_custom_call.1} parent=11 // pred_check
          %p191 = pneg %p102
        $region22: #{tpu_custom_call.1} parent=11 // pred_check_branch
          %193 = sbr.rel (%p191) target = $region24
        $region23: #{tpu_custom_call.1} parent=11 // pred_region
          _
        $region24: #{tpu_custom_call.1} parent=11 // pred_fallthru
          _
        // Predicated region
        $region25: #{tpu_custom_call.1} parent=11 // pred_check
          %p194 = pneg %p123
        $region26: #{tpu_custom_call.1} parent=11 // pred_check_branch
          %196 = sbr.rel (%p194) target = $region28
        $region27: #{tpu_custom_call.1} parent=11 // pred_region
          _
        $region28: #{tpu_custom_call.1} parent=11 // pred_fallthru
          _
      $region12: #{tpu_custom_call.1} parent=5 // pred_fallthru
        _
      %p197 = scmp.lt.s32.totalorder %s13, 3
      // Predicated region
      $region29: #{tpu_custom_call.1} parent=5 // pred_check
        %p198 = pneg %p197
      $region30: #{tpu_custom_call.1} parent=5 // pred_check_branch
        %200 = sbr.rel (%p198) target = $region32
      $region31: #{tpu_custom_call.1} parent=5 // pred_region
        // Predicated region
        $region33: #{tpu_custom_call.1} parent=31 // pred_check
          %p201 = pneg %p33
        $region34: #{tpu_custom_call.1} parent=31 // pred_check_branch
          %203 = sbr.rel (%p201) target = $region36
        $region35: #{tpu_custom_call.1} parent=31 // pred_region
          %p204 = scmp.lt.s32.totalorder %s13, 2
          %s205 = scalar_select %p204, %s13, 2
          %s206 = smul.addr %s205, 8
          %s207 = scalar_lea.vmem %s0, %s206
        $region36: #{tpu_custom_call.1} parent=31 // pred_fallthru
          _
        // Predicated region
        $region37: #{tpu_custom_call.1} parent=31 // pred_check
          %p208 = pneg %p143
        $region38: #{tpu_custom_call.1} parent=31 // pred_check_branch
          %210 = sbr.rel (%p208) target = $region40
        $region39: #{tpu_custom_call.1} parent=31 // pred_region
          %p211 = scmp.lt.s32.totalorder %s13, 2
          %s212 = scalar_select %p211, %s13, 2
          %s213 = smul.addr %s212, 8
          %s214 = scalar_lea.vmem %s5, %s213
        $region40: #{tpu_custom_call.1} parent=31 // pred_fallthru
          _
      $region32: #{tpu_custom_call.1} parent=5 // pred_fallthru
        _
      %p215 = scmp.le.s32.totalorder 1, %s13
      %p216 = scmp.lt.s32.totalorder %s13, 4
      %p217 = pnand %p215, %p216
      %p218 = pneg %p217
      // Predicated region
      $region41: #{tpu_custom_call.1} parent=5 // pred_check
        _
      $region42: #{tpu_custom_call.1} parent=5 // pred_check_branch
        %220 = sbr.rel (%p217) target = $region44
      $region43: #{tpu_custom_call.1} parent=5 // pred_region
        %s221 = ssub.s32 %s13, 1
        %p222 = scmp.lt.s32.totalorder %s18, 2
        %s223 = scalar_select %p222, %s18, 2
        %s224 = smul.addr %s223, 8
        %s225 = scalar_lea.vmem %s0, %s224
        %p226 = pneg %p39
        %p227 = pneg %p36
        %p228 = pneg %p60
        %p229 = pneg %p57
        %p230 = pneg %p81
        %p231 = pneg %p78
        %p232 = pneg %p102
        %p233 = pneg %p99
        %p234 = pneg %p123
        %p235 = pneg %p120
        %p236 = scmp.lt.s32.totalorder %s18, 2
        %s237 = scalar_select %p236, %s18, 2
        %s238 = smul.addr %s237, 8
        %s239 = scalar_lea.vmem %s5, %s238
        %p240 = pneg %p149
        %p241 = pneg %p146
        %p242 = pneg %p170
        %p243 = pneg %p167
        %p244 = scmp.lt.s32.totalorder %s18, 2
        %s245 = scalar_select %p244, %s18, 2
        %s246 = smul.addr %s245, 8
        %s247 = scalar_lea.vmem %s0, %s246
        %p248 = scmp.lt.s32.totalorder %s18, 2
        %s249 = scalar_select %p248, %s18, 2
        %s250 = smul.addr %s249, 8
        %s251 = scalar_lea.vmem %s5, %s250
        %p252 = scmp.eq.s32.totalorder %s18, 0
        // Predicated region
        $region45: #{tpu_custom_call.1} parent=43 // pred_check
          %p253 = pneg %p252
        $region46: #{tpu_custom_call.1} parent=43 // pred_check_branch
          %255 = sbr.rel (%p253) target = $region48
        $region47: #{tpu_custom_call.1} parent=43 // pred_region
          %256 = vst [vmem:[#allocation2] sm:$0xff] 0.0
        $region48: #{tpu_custom_call.1} parent=43 // pred_fallthru
          _
        %v257 = vld [vmem:[%s247] sm:$0xff]
        %v258 = vld [vmem:[%s1] sm:$0xf]
        %v259 = vld [vmem:[%s2] sm:$0x1]
        %v261 = vlaneseq
        %v262 = vshrl.u32 %v261, 7
        %v263 = vsub.s32 0, %v262
        %v264 = vrot.slane %v259, %v263
        %vm266 = vcmask 31744
        %v268 = vsel %vm266, %v257, 0
        %vm270 = vcmask 1043456
        %v272 = vsel %vm270, %v258, 0
        %274 = vmatprep.subr.mxu0 0.0
        %275 = vmatpush1.msra.mxu0 %v272
        %276 = vmatprep.subr.mxu0 0.0
        %277 = vmatpush1.msra.mxu0 0.0
        %278 = vmatprep.subr.mxu0 0.0
        %279 = vmatpush1.msra.mxu0 0.0
        %280 = vmatprep.subr.mxu0 0.0
        %281 = vmatpush1.msra.mxu0 0.0
        %282 = vmatprep.subr.mxu0 0.0
        %283 = vmatpush1.msra.mxu0 0.0
        %284 = vmatprep.subr.mxu0 0.0
        %285 = vmatpush1.msra.mxu0 0.0
        %286 = vmatprep.subr.mxu0 0.0
        %287 = vmatpush1.msra.mxu0 0.0
        %288 = vmatprep.subr.mxu0 0.0
        %289 = vmatpush1.msra.mxu0 0.0
        %290 = vmatprep.subr.mxu0 0.0
        %291 = vmatpush1.msra.mxu0 0.0
        %292 = vmatprep.subr.mxu0 0.0
        %293 = vmatpush1.msra.mxu0 0.0
        %294 = vmatprep.subr.mxu0 0.0
        %295 = vmatpush1.msra.mxu0 0.0
        %296 = vmatprep.subr.mxu0 0.0
        %297 = vmatpush1.msra.mxu0 0.0
        %298 = vmatprep.subr.mxu0 0.0
        %299 = vmatpush1.msra.mxu0 0.0
        %300 = vmatprep.subr.mxu0 0.0
        %301 = vmatpush1.msra.mxu0 0.0
        %302 = vmatprep.subr.mxu0 0.0
        %303 = vmatpush1.msra.mxu0 0.0
        %304 = vmatprep.subr.mxu0 0.0
        %305 = vmatpush1.msra.mxu0 0.0
        %306 = vmatprep.subr.mxu0 0.0
        %307 = vmatpush1.msra.mxu0 0.0
        %308 = vmatprep.subr.mxu0 0.0
        %309 = vmatpush1.msra.mxu0 0.0
        %310 = vmatprep.subr.mxu0 0.0
        %311 = vmatpush1.msra.mxu0 0.0
        %312 = vmatprep.subr.mxu0 0.0
        %313 = vmatpush1.msra.mxu0 0.0
        %314 = vmatprep.subr.mxu0 0.0
        %315 = vmatpush1.msra.mxu0 0.0
        %316 = vmatprep.subr.mxu0 0.0
        %317 = vmatpush1.msra.mxu0 0.0
        %318 = vmatprep.subr.mxu0 0.0
        %319 = vmatpush1.msra.mxu0 0.0
        %320 = vmatprep.subr.mxu0 0.0
        %321 = vmatpush1.msra.mxu0 0.0
        %322 = vmatprep.subr.mxu0 0.0
        %323 = vmatpush1.msra.mxu0 0.0
        %324 = vmatprep.subr.mxu0 0.0
        %325 = vmatpush1.msra.mxu0 0.0
        %326 = vmatprep.subr.mxu0 0.0
        %327 = vmatpush1.msra.mxu0 0.0
        %328 = vmatprep.subr.mxu0 0.0
        %329 = vmatpush1.msra.mxu0 0.0
        %330 = vmatprep.subr.mxu0 0.0
        %331 = vmatpush1.msra.mxu0 0.0
        %332 = vmatprep.subr.mxu0 0.0
        %333 = vmatpush1.msra.mxu0 0.0
        %334 = vmatprep.subr.mxu0 0.0
        %335 = vmatpush1.msra.mxu0 0.0
        %336 = vmatprep.subr.mxu0 0.0
        %337 = vmatpush1.msra.mxu0 0.0
        %338 = vmatprep.mubr.f32.mxu0 0.0
        %339 = vmatmul.mubr.f32.gmra.mrb[0].mxu0 %v268
        %v340 = vpop.f32.mrb[0].mxu0
        %v341 = vadd.f32 %v264, %v340
        %v342 = vpop.f32.mrb[0].mxu0
        %343 = vdwg.mxu0
        %v344 = vmax.f32 %v341, 0.0
        %v345 = vld [vmem:[%s3] sm:$0xff]
        %v346 = vld [vmem:[%s3 + $0x8] sm:$0xff]
        %v347 = vld [vmem:[%s3 + $0x10] sm:$0xff]
        %v348 = vld [vmem:[%s3 + $0x18] sm:$0xff]
        %v349 = vld [vmem:[%s4] sm:$0x1]
        %v351 = vlaneseq
        %v352 = vshrl.u32 %v351, 7
        %v353 = vsub.s32 0, %v352
        %v354 = vrot.slane %v349, %v353
        %vm356 = vcmask 261120
        %v358 = vsel %vm356, %v344, 0
        %360 = vmatprep.subr.mxu0 0.0
        %361 = vmatpush1.msra.mxu0 %v345
        %362 = vmatprep.subr.mxu0 0.0
        %363 = vmatpush1.msra.mxu0 %v346
        %364 = vmatprep.subr.mxu0 0.0
        %365 = vmatpush1.msra.mxu0 %v347
        %366 = vmatprep.subr.mxu0 0.0
        %367 = vmatpush1.msra.mxu0 %v348
        %368 = vmatprep.subr.mxu0 0.0
        %369 = vmatpush1.msra.mxu0 0.0
        %370 = vmatprep.subr.mxu0 0.0
        %371 = vmatpush1.msra.mxu0 0.0
        %372 = vmatprep.subr.mxu0 0.0
        %373 = vmatpush1.msra.mxu0 0.0
        %374 = vmatprep.subr.mxu0 0.0
        %375 = vmatpush1.msra.mxu0 0.0
        %376 = vmatprep.subr.mxu0 0.0
        %377 = vmatpush1.msra.mxu0 0.0
        %378 = vmatprep.subr.mxu0 0.0
        %379 = vmatpush1.msra.mxu0 0.0
        %380 = vmatprep.subr.mxu0 0.0
        %381 = vmatpush1.msra.mxu0 0.0
        %382 = vmatprep.subr.mxu0 0.0
        %383 = vmatpush1.msra.mxu0 0.0
        %384 = vmatprep.subr.mxu0 0.0
        %385 = vmatpush1.msra.mxu0 0.0
        %386 = vmatprep.subr.mxu0 0.0
        %387 = vmatpush1.msra.mxu0 0.0
        %388 = vmatprep.subr.mxu0 0.0
        %389 = vmatpush1.msra.mxu0 0.0
        %390 = vmatprep.subr.mxu0 0.0
        %391 = vmatpush1.msra.mxu0 0.0
        %392 = vmatprep.subr.mxu0 0.0
        %393 = vmatpush1.msra.mxu0 0.0
        %394 = vmatprep.subr.mxu0 0.0
        %395 = vmatpush1.msra.mxu0 0.0
        %396 = vmatprep.subr.mxu0 0.0
        %397 = vmatpush1.msra.mxu0 0.0
        %398 = vmatprep.subr.mxu0 0.0
        %399 = vmatpush1.msra.mxu0 0.0
        %400 = vmatprep.subr.mxu0 0.0
        %401 = vmatpush1.msra.mxu0 0.0
        %402 = vmatprep.subr.mxu0 0.0
        %403 = vmatpush1.msra.mxu0 0.0
        %404 = vmatprep.subr.mxu0 0.0
        %405 = vmatpush1.msra.mxu0 0.0
        %406 = vmatprep.subr.mxu0 0.0
        %407 = vmatpush1.msra.mxu0 0.0
        %408 = vmatprep.subr.mxu0 0.0
        %409 = vmatpush1.msra.mxu0 0.0
        %410 = vmatprep.subr.mxu0 0.0
        %411 = vmatpush1.msra.mxu0 0.0
        %412 = vmatprep.subr.mxu0 0.0
        %413 = vmatpush1.msra.mxu0 0.0
        %414 = vmatprep.subr.mxu0 0.0
        %415 = vmatpush1.msra.mxu0 0.0
        %416 = vmatprep.subr.mxu0 0.0
        %417 = vmatpush1.msra.mxu0 0.0
        %418 = vmatprep.subr.mxu0 0.0
        %419 = vmatpush1.msra.mxu0 0.0
        %420 = vmatprep.subr.mxu0 0.0
        %421 = vmatpush1.msra.mxu0 0.0
        %422 = vmatprep.subr.mxu0 0.0
        %423 = vmatpush1.msra.mxu0 0.0
        %424 = vmatprep.mubr.f32.mxu0 0.0
        %425 = vmatmul.mubr.f32.gmra.mrb[0].mxu0 %v358
        %v426 = vpop.f32.mrb[0].mxu0
        %v427 = vadd.f32 %v354, %v426
        %v428 = vpop.f32.mrb[0].mxu0
        %429 = vdwg.mxu0
        %v430 = vld [vmem:[%s251] sm:$0xff]
        %v431 = vlaneseq
        %v432 = vand.u32 %v431, 127
        %433 = vset.pattern.permute.xlu0 0
        %434 = vperm.xlu0 %433, %v430
        %v435 = vpop.permute.xlu0 %434
        %vm436 = vcmp.eq.s32.totalorder %v435, %v432
        %v437 = vsel %vm436, 1, 0
        %v438 = vcvt.s32.f32 %v437
        %v439 = vld [vmem:[#allocation2] sm:$0xff]
        %440 = vxpose.xlu0.b32.start [1/16] %v438, 128
        %441 = vxpose.xlu0.b32.cont [2/16] 0.0, 128
        %442 = vxpose.xlu0.b32.cont [3/16] 0.0, 128
        %443 = vxpose.xlu0.b32.cont [4/16] 0.0, 128
        %444 = vxpose.xlu0.b32.cont [5/16] 0.0, 128
        %445 = vxpose.xlu0.b32.cont [6/16] 0.0, 128
        %446 = vxpose.xlu0.b32.cont [7/16] 0.0, 128
        %447 = vxpose.xlu0.b32.cont [8/16] 0.0, 128
        %448 = vxpose.xlu0.b32.cont [9/16] 0.0, 128
        %449 = vxpose.xlu0.b32.cont [10/16] 0.0, 128
        %450 = vxpose.xlu0.b32.cont [11/16] 0.0, 128
        %451 = vxpose.xlu0.b32.cont [12/16] 0.0, 128
        %452 = vxpose.xlu0.b32.cont [13/16] 0.0, 128
        %453 = vxpose.xlu0.b32.cont [14/16] 0.0, 128
        %454 = vxpose.xlu0.b32.cont [15/16] 0.0, 128
        %455 = vxpose.xlu0.b32.end [16/16] 0.0, 128
        %v456 = vpop.trf.xlu0
        %v457 = vpop.trf.xlu0
        %v458 = vpop.trf.xlu0
        %v459 = vpop.trf.xlu0
        %v460 = vpop.trf.xlu0
        %v461 = vpop.trf.xlu0
        %v462 = vpop.trf.xlu0
        %v463 = vpop.trf.xlu0
        %v464 = vpop.trf.xlu0
        %v465 = vpop.trf.xlu0
        %v466 = vpop.trf.xlu0
        %v467 = vpop.trf.xlu0
        %v468 = vpop.trf.xlu0
        %v469 = vpop.trf.xlu0
        %v470 = vpop.trf.xlu0
        %v471 = vpop.trf.xlu0
        %vm472 = vcmask 64512
        %v474 = vsel %vm472, %v456, 0
        %476 = vmatprep.subr.mxu0 0.0
        %477 = vmatpush1.msra.mxu0 %v427
        %478 = vmatprep.subr.mxu0 0.0
        %479 = vmatpush1.msra.mxu0 0.0
        %480 = vmatprep.subr.mxu0 0.0
        %481 = vmatpush1.msra.mxu0 0.0
        %482 = vmatprep.subr.mxu0 0.0
        %483 = vmatpush1.msra.mxu0 0.0
        %484 = vmatprep.subr.mxu0 0.0
        %485 = vmatpush1.msra.mxu0 0.0
        %486 = vmatprep.subr.mxu0 0.0
        %487 = vmatpush1.msra.mxu0 0.0
        %488 = vmatprep.subr.mxu0 0.0
        %489 = vmatpush1.msra.mxu0 0.0
        %490 = vmatprep.subr.mxu0 0.0
        %491 = vmatpush1.msra.mxu0 0.0
        %492 = vmatprep.subr.mxu0 0.0
        %493 = vmatpush1.msra.mxu0 0.0
        %494 = vmatprep.subr.mxu0 0.0
        %495 = vmatpush1.msra.mxu0 0.0
        %496 = vmatprep.subr.mxu0 0.0
        %497 = vmatpush1.msra.mxu0 0.0
        %498 = vmatprep.subr.mxu0 0.0
        %499 = vmatpush1.msra.mxu0 0.0
        %500 = vmatprep.subr.mxu0 0.0
        %501 = vmatpush1.msra.mxu0 0.0
        %502 = vmatprep.subr.mxu0 0.0
        %503 = vmatpush1.msra.mxu0 0.0
        %504 = vmatprep.subr.mxu0 0.0
        %505 = vmatpush1.msra.mxu0 0.0
        %506 = vmatprep.subr.mxu0 0.0
        %507 = vmatpush1.msra.mxu0 0.0
        %508 = vmatprep.subr.mxu0 0.0
        %509 = vmatpush1.msra.mxu0 0.0
        %510 = vmatprep.subr.mxu0 0.0
        %511 = vmatpush1.msra.mxu0 0.0
        %512 = vmatprep.subr.mxu0 0.0
        %513 = vmatpush1.msra.mxu0 0.0
        %514 = vmatprep.subr.mxu0 0.0
        %515 = vmatpush1.msra.mxu0 0.0
        %516 = vmatprep.subr.mxu0 0.0
        %517 = vmatpush1.msra.mxu0 0.0
        %518 = vmatprep.subr.mxu0 0.0
        %519 = vmatpush1.msra.mxu0 0.0
        %520 = vmatprep.subr.mxu0 0.0
        %521 = vmatpush1.msra.mxu0 0.0
        %522 = vmatprep.subr.mxu0 0.0
        %523 = vmatpush1.msra.mxu0 0.0
        %524 = vmatprep.subr.mxu0 0.0
        %525 = vmatpush1.msra.mxu0 0.0
        %526 = vmatprep.subr.mxu0 0.0
        %527 = vmatpush1.msra.mxu0 0.0
        %528 = vmatprep.subr.mxu0 0.0
        %529 = vmatpush1.msra.mxu0 0.0
        %530 = vmatprep.subr.mxu0 0.0
        %531 = vmatpush1.msra.mxu0 0.0
        %532 = vmatprep.subr.mxu0 0.0
        %533 = vmatpush1.msra.mxu0 0.0
        %534 = vmatprep.subr.mxu0 0.0
        %535 = vmatpush1.msra.mxu0 0.0
        %536 = vmatprep.subr.mxu0 0.0
        %537 = vmatpush1.msra.mxu0 0.0
        %538 = vmatprep.subr.mxu0 0.0
        %539 = vmatpush1.msra.mxu0 0.0
        %540 = vmatprep.mubr.f32.mxu0 0.0
        %541 = vmatmul.mubr.f32.gmra.mrb[0].mxu0 %v474
        %v542 = vpop.f32.mrb[0].mxu0
        %v543 = vadd.f32 0.0, %v542
        %v544 = vpop.f32.mrb[0].mxu0
        %545 = vdwg.mxu0
        %v546 = vadd.f32 %v439, %v543
        %547 = vst [vmem:[#allocation2] sm:$0xff] %v546
        %p548 = scmp.eq.s32.totalorder %s18, 2
        // Predicated region
        $region49: #{tpu_custom_call.1} parent=43 // pred_check
          %p549 = pneg %p548
        $region50: #{tpu_custom_call.1} parent=43 // pred_check_branch
          %551 = sbr.rel (%p549) target = $region52
        $region51: #{tpu_custom_call.1} parent=43 // pred_region
          %v552 = vld [vmem:[#allocation2] sm:$0xff]
          %v553 = vmax.f32 %v552, 0.0
          %554 = vmax.xlane.f32.xlu0 %v553
          %v555 = vpop.xlane.xlu0 %554
          %vm556 = vcmp.gt.f32.partialorder %v555, 0.0
          %v557 = vsel %vm556, %v555, 1.0
          %v558 = vrcp.pop %v557
          %v559 = vmul.f32 %v553, %v558
          %560 = vst [vmem:[#allocation2] sm:$0xff] %v559
        $region52: #{tpu_custom_call.1} parent=43 // pred_fallthru
          _
        // Predicated region
        $region53: #{tpu_custom_call.1} parent=43 // pred_check
          %p561 = pneg %p167
        $region54: #{tpu_custom_call.1} parent=43 // pred_check_branch
          %563 = sbr.rel (%p561) target = $region56
        $region55: #{tpu_custom_call.1} parent=43 // pred_region
          %s565 = ssub.s32 128, 128
          %566 = vsyncadd [#allocation3], %s565
          %s568 = sshll.u32 [#allocation2], 4
          %s569 = int_to_ptr.vmem [resolvable:$true] %s568
          %571 = dma.vmem_to_hbm [thread:$0]  %s569, 128, %s6, [#allocation3]
        $region56: #{tpu_custom_call.1} parent=43 // pred_fallthru
          _
        // Predicated region
        $region57: #{tpu_custom_call.1} parent=43 // pred_check
          %p572 = pneg %p167
        $region58: #{tpu_custom_call.1} parent=43 // pred_check_branch
          %574 = sbr.rel (%p572) target = $region60
        $region59: #{tpu_custom_call.1} parent=43 // pred_region
          %575 = dma.done [#allocation3], 128
        $region60: #{tpu_custom_call.1} parent=43 // pred_fallthru
          _
      $region44: #{tpu_custom_call.1} parent=5 // pred_fallthru
        _
      %p576 = scmp.le.s32.totalorder 2, %s13
      // Predicated region
      $region61: #{tpu_custom_call.1} parent=5 // pred_check
        %p577 = pneg %p576
      $region62: #{tpu_custom_call.1} parent=5 // pred_check_branch
        %579 = sbr.rel (%p577) target = $region64
      $region63: #{tpu_custom_call.1} parent=5 // pred_region
        %s580 = ssub.s32 %s13, 2
      $region64: #{tpu_custom_call.1} parent=5 // pred_fallthru
        _
    $region6: #{tpu_custom_call.1} parent=1 // loop_footer
      %s17 = sadd.s32 1, %s13
    $region7: #{tpu_custom_call.1} parent=1 // loop_footer_branch
      %12 = sbr.rel target = $region3
    $region8: #{tpu_custom_call.1} parent=1 // loop_exit
      _
    %581 = vsyncpa [#allocation3], 1
    %s582 = scalar_lea.sflag [#allocation3], 1
    %583 = vsyncpa %s582, 1

</llo_original>
